<compile_context>
chip_gen: v6e
topology: v6e:2x2x1
jax: 0.10.0
libtpu: 0.0.40
codegen_flags: <defaults>
</compile_context>

<pallas_src>
import functools

import jax
import jax.numpy as jnp
from jax.experimental import pallas as pl
from jax.experimental.pallas import tpu as pltpu


def _round_up(n: int, m: int) -> int:
    return ((n + m - 1) // m) * m


def _linear_subspace_kernel(x_ref, alpha_ref, wb_ref, o_ref, lhs_ref):
    """x:(TB,IN)  alpha:(TB,A)  wb:(K,TO) with K=A*IN+A  o:(TB,TO)  lhs:(TB,K)."""
    n_anchors = alpha_ref.shape[-1]
    in_dim = x_ref.shape[-1]

    x = x_ref[...].astype(jnp.float32)
    alpha = alpha_ref[...].astype(jnp.float32)

    # Assemble fused LHS = [alpha_0*x | ... | alpha_{A-1}*x | alpha] in VMEM.
    # Scales are computed in f32; all broadcasts are issued up front so the
    # scheduler can overlap them with the weight DMA / matmul.
    for a in range(n_anchors):
        lhs_ref[:, a * in_dim:(a + 1) * in_dim] = (
            alpha[:, a:a + 1] * x).astype(lhs_ref.dtype)
    lhs_ref[:, n_anchors * in_dim:n_anchors * in_dim + n_anchors] = (
        alpha.astype(lhs_ref.dtype))

    # Single MXU matmul (anchors + bias fused), f32 accumulation.
    o_ref[...] = jnp.dot(
        lhs_ref[...], wb_ref[...], preferred_element_type=jnp.float32
    ).astype(o_ref.dtype)


def fuse_params(W, bias):
    """One-time parameter transform: (A,IN,OUT),(A,OUT) -> (A*IN+A, OUTp).

    In real use call this once at module init (weights are parameters), not
    in the per-step hot path.
    """
    A, IN, OUT = W.shape
    OUTp = _round_up(OUT, 128)
    wb = jnp.concatenate([W.reshape(A * IN, OUT), bias.astype(W.dtype)], axis=0)
    if OUTp != OUT:
        wb = jnp.pad(wb, ((0, 0), (0, OUTp - OUT)))
    return wb


@functools.partial(jax.jit, static_argnames=("out_channels", "tb", "to"))
def _linear_subspace_fused(x, alpha, wb, *, out_channels, tb=256, to=256):
    B, IN = x.shape
    _, A = alpha.shape
    K, OUTp = wb.shape
    assert K == A * IN + A, "wb must be fuse_params(W, bias)"

    # Batch tiling (sublane multiples); OUT tile is a 128-multiple divisor of
    # the 128-padded OUT so no extra weight padding / dead lanes are added.
    TB = min(tb, _round_up(B, 8))
    Bp = _round_up(B, TB)
    to_cap = max(128, (min(to, OUTp) // 128) * 128)
    TO = next(c for c in range(to_cap, 0, -128) if OUTp % c == 0)

    x_p = x if Bp == B else jnp.pad(x, ((0, Bp - B), (0, 0)))
    a_p = alpha if Bp == B else jnp.pad(alpha, ((0, Bp - B), (0, 0)))

    lhs_dtype = jnp.promote_types(x.dtype, wb.dtype)

    # VMEM budget from the actual (double-buffered) block sizes + LHS scratch.
    def _blk_bytes(rows, cols, dt):
        return _round_up(rows, 8) * _round_up(cols, 128) * jnp.dtype(dt).itemsize

    need = 2 * (_blk_bytes(TB, IN, x.dtype)
                + _blk_bytes(TB, A, alpha.dtype)
                + _blk_bytes(K, TO, wb.dtype)
                + _blk_bytes(TB, TO, x.dtype))
    need += _blk_bytes(TB, K, lhs_dtype) + (4 << 20)           # scratch + margin
    vmem_limit = int(min(max(need, 32 << 20), 100 << 20))

    # Weight-stationary order: OUT tiles outer, batch tiles inner -> the wb
    # block index is unchanged across inner steps and is not re-DMA'd.
    grid = (OUTp // TO, Bp // TB)

    out_p = pl.pallas_call(
        _linear_subspace_kernel,
        out_shape=jax.ShapeDtypeStruct((Bp, OUTp), x.dtype),
        grid=grid,
        in_specs=[
            pl.BlockSpec((TB, IN), lambda oi, bi: (bi, 0)),    # x rows
            pl.BlockSpec((TB, A), lambda oi, bi: (bi, 0)),     # alpha rows
            pl.BlockSpec((K, TO), lambda oi, bi: (0, oi)),     # fused W+bias
        ],
        out_specs=pl.BlockSpec((TB, TO), lambda oi, bi: (bi, oi)),
        scratch_shapes=[pltpu.VMEM((TB, K), lhs_dtype)],       # fused LHS
        compiler_params=pltpu.CompilerParams(
            dimension_semantics=("parallel", "parallel"),
            vmem_limit_bytes=vmem_limit,
        ),
    )(x_p, a_p, wb)

    if Bp == B and OUTp == out_channels:
        return out_p
    return out_p[:B, :out_channels]


def linear_subspace(x, alpha, W, bias=None, *, tb=256, to=256):
    """x: (B, IN), alpha: (B, A), W: (A, IN, OUT), bias: (A, OUT) -> (B, OUT)."""
    A, IN, OUT = W.shape
    if bias is None:
        bias = jnp.zeros((A, OUT), W.dtype)
    wb = fuse_params(W, bias)   # parameter transform; hoist to init in real use
    return _linear_subspace_fused(x, alpha, wb, out_channels=OUT, tb=tb, to=to)


def _reference(x, alpha, W, bias):
    # Pure-JAX reference matching the PyTorch forward.
    ys = jnp.einsum("bi,aio->bao", x, W) + bias[None, :, :]    # (B, A, OUT)
    return jnp.einsum("bao,ba->bo", ys, alpha)


if __name__ == "__main__":
    # Small shapes consistent with the module: Linear(in, out) per anchor.
    B, IN, OUT, A = 8, 32, 32, 3

    key = jax.random.PRNGKey(0)
    kx, ka, kw, kb = jax.random.split(key, 4)

    x = jax.random.normal(kx, (B, IN), dtype=jnp.float32)

    # alpha: mixture weights (softmax rows sum to 1), like Dirichlet samples.
    alpha = jax.nn.softmax(jax.random.normal(ka, (B, A), dtype=jnp.float32), axis=-1)

    # Deterministic nn.Linear-style init: U(-1/sqrt(in), 1/sqrt(in)).
    bound = 1.0 / (IN ** 0.5)
    W = jax.random.uniform(kw, (A, IN, OUT), minval=-bound, maxval=bound,
                           dtype=jnp.float32)
    bias = jax.random.uniform(kb, (A, OUT), minval=-bound, maxval=bound,
                              dtype=jnp.float32)

    out = linear_subspace(x, alpha, W, bias)
    out = jax.block_until_ready(out)

    ref = _reference(x, alpha, W, bias)
    assert out.shape == (B, OUT)
    assert jnp.allclose(out, ref, atol=1e-4, rtol=1e-4), "mismatch vs reference"

    print("KERNEL_OK")
</pallas_src>

<mosaic_0001>
module attributes {stable_mosaic.version = 11 : i64} {
  func.func @_linear_subspace_kernel(%arg0: i32, %arg1: i32, %arg2: memref<8x32xf32, #tpu.memory_space<vmem>>, %arg3: memref<8x3xf32, #tpu.memory_space<vmem>>, %arg4: memref<99x128xf32, #tpu.memory_space<vmem>>, %arg5: memref<8x128xf32, #tpu.memory_space<vmem>>, %arg6: memref<8x99xf32, #tpu.memory_space<vmem>>) attributes {dimension_semantics = [#tpu.dimension_semantics<parallel>, #tpu.dimension_semantics<parallel>], iteration_bounds = array<i64: 1, 1>, scalar_prefetch = 0 : i64, scratch_operands = 1 : i64, tpu.core_type = #tpu.core_type<tc>, window_params = [{transform_indices = @transform_0, window_bounds = array<i64: 8, 32>}, {transform_indices = @transform_1, window_bounds = array<i64: 8, 3>}, {transform_indices = @transform_2, window_bounds = array<i64: 99, 128>}, {transform_indices = @transform_3, window_bounds = array<i64: 8, 128>}]} {
    %c0 = arith.constant 0 : index
    %c0_0 = arith.constant 0 : index
    %0 = vector.load %arg2[%c0, %c0_0] : memref<8x32xf32, #tpu.memory_space<vmem>>, vector<8x32xf32>
    %c0_1 = arith.constant 0 : index
    %c0_2 = arith.constant 0 : index
    %1 = vector.load %arg3[%c0_1, %c0_2] : memref<8x3xf32, #tpu.memory_space<vmem>>, vector<8x3xf32>
    %2 = vector.extract_strided_slice %1 {offsets = [0, 0], sizes = [8, 1], strides = [1, 1]} : vector<8x3xf32> to vector<8x1xf32>
    %3 = vector.broadcast %2 : vector<8x1xf32> to vector<8x32xf32>
    %4 = arith.mulf %3, %0 : vector<8x32xf32>
    %c0_3 = arith.constant 0 : index
    %c0_4 = arith.constant 0 : index
    %5 = vector.load %arg6[%c0_3, %c0_4] : memref<8x99xf32, #tpu.memory_space<vmem>>, vector<8x32xf32>
    tpu.vector_store %arg6[%c0_3, %c0_4], %4 {strides = array<i32>} : memref<8x99xf32, #tpu.memory_space<vmem>>, vector<8x32xf32>,
    %6 = vector.extract_strided_slice %1 {offsets = [0, 1], sizes = [8, 1], strides = [1, 1]} : vector<8x3xf32> to vector<8x1xf32>
    %7 = vector.broadcast %6 : vector<8x1xf32> to vector<8x32xf32>
    %8 = arith.mulf %7, %0 : vector<8x32xf32>
    %c0_5 = arith.constant 0 : index
    %c32 = arith.constant 32 : index
    %9 = vector.load %arg6[%c0_5, %c32] : memref<8x99xf32, #tpu.memory_space<vmem>>, vector<8x32xf32>
    tpu.vector_store %arg6[%c0_5, %c32], %8 {strides = array<i32>} : memref<8x99xf32, #tpu.memory_space<vmem>>, vector<8x32xf32>,
    %10 = vector.extract_strided_slice %1 {offsets = [0, 2], sizes = [8, 1], strides = [1, 1]} : vector<8x3xf32> to vector<8x1xf32>
    %11 = vector.broadcast %10 : vector<8x1xf32> to vector<8x32xf32>
    %12 = arith.mulf %11, %0 : vector<8x32xf32>
    %c0_6 = arith.constant 0 : index
    %c64 = arith.constant 64 : index
    %13 = vector.load %arg6[%c0_6, %c64] : memref<8x99xf32, #tpu.memory_space<vmem>>, vector<8x32xf32>
    tpu.vector_store %arg6[%c0_6, %c64], %12 {strides = array<i32>} : memref<8x99xf32, #tpu.memory_space<vmem>>, vector<8x32xf32>,
    %c0_7 = arith.constant 0 : index
    %c96 = arith.constant 96 : index
    %14 = vector.load %arg6[%c0_7, %c96] : memref<8x99xf32, #tpu.memory_space<vmem>>, vector<8x3xf32>
    tpu.vector_store %arg6[%c0_7, %c96], %1 {strides = array<i32>} : memref<8x99xf32, #tpu.memory_space<vmem>>, vector<8x3xf32>,
    %c0_8 = arith.constant 0 : index
    %c0_9 = arith.constant 0 : index
    %15 = vector.load %arg6[%c0_8, %c0_9] : memref<8x99xf32, #tpu.memory_space<vmem>>, vector<8x99xf32>
    %c0_10 = arith.constant 0 : index
    %c0_11 = arith.constant 0 : index
    %16 = vector.load %arg4[%c0_10, %c0_11] : memref<99x128xf32, #tpu.memory_space<vmem>>, vector<99x128xf32>
    %cst = arith.constant dense<0.000000e+00> : vector<8x128xf32>
    %17 = tpu.matmul %15, %16, %cst {dimension_numbers = #tpu.dot_dimension_numbers<[1], [0], [0], [1], [0, 0, 1, 1], [], []>} : vector<8x99xf32>, vector<99x128xf32>, vector<8x128xf32> -> vector<8x128xf32>
    %c0_12 = arith.constant 0 : index
    %c0_13 = arith.constant 0 : index
    %18 = vector.load %arg5[%c0_12, %c0_13] : memref<8x128xf32, #tpu.memory_space<vmem>>, vector<8x128xf32>
    tpu.vector_store %arg5[%c0_12, %c0_13], %17 {strides = array<i32>} : memref<8x128xf32, #tpu.memory_space<vmem>>, vector<8x128xf32>,
    return
  }
  func.func @transform_0(%arg0: i32, %arg1: i32) -> (i32, i32) {
    %c0_i32 = arith.constant 0 : i32
    %c0_i32_0 = arith.constant 0 : i32
    return %arg1, %c0_i32 : i32, i32
  }
  func.func @transform_1(%arg0: i32, %arg1: i32) -> (i32, i32) {
    %c0_i32 = arith.constant 0 : i32
    %c0_i32_0 = arith.constant 0 : i32
    return %arg1, %c0_i32 : i32, i32
  }
  func.func @transform_2(%arg0: i32, %arg1: i32) -> (i32, i32) {
    %c0_i32 = arith.constant 0 : i32
    %c0_i32_0 = arith.constant 0 : i32
    return %c0_i32, %arg0 : i32, i32
  }
  func.func @transform_3(%arg0: i32, %arg1: i32) -> (i32, i32) {
    %c0_i32 = arith.constant 0 : i32
    return %arg1, %arg0 : i32, i32
  }
}

</mosaic_0001>

<llo_original>
// kernel: _linear_subspace_fused.1
$region0: #{_linear_subspace_fused.1}
  #allocation0 [shape = 'u32[]', space=smem, size = 0x4, offset = 0x4, fixed_abs, tag = 'smem constant byte address 0x4 - core index']
  #allocation1 [shape = 'u32[144,128]{1,0:T(1,128)}', space=vmem, size = 0x12000, scoped, tag = 'internal scratch']
  #allocation2 [shape = 'f32[8,99]{1,0:T(8,128)}', space=vmem, size = 0x1000, scoped, tag = 'scratch operand']
  %s0 = inlined_call_operand.vmem [shape: f32[8,32], index: 0, kind: input, shape index: {}]
  %s1 = inlined_call_operand.vmem [shape: f32[8,3], index: 1, kind: input, shape index: {}]
  %s2 = inlined_call_operand.hbm [shape: f32[99,128], index: 2, kind: input, shape index: {}]
  %s3 = inlined_call_operand.hbm [shape: f32[8,128], index: 3, kind: output, shape index: {}]
  %s4 = sld [smem:[#allocation0]]
  $region26: #{_linear_subspace_fused.1} parent=0
    _
  %s6 = ssub.s32 1, %s4
  %s7 = scalar_select 0, %s6, %s4
  $region1: #{_linear_subspace_fused.1} parent=0
    #allocation3 [shape = 'u8[53248]{0}', space=vmem, size = 0xd000, scoped, tag = 'input window, operand 2, single buffered']
    #allocation4 [shape = 's32[1]{0}', space=sflag, size = 0x4, scoped, tag = 'scoped memory for _linear_subspace_fused.1']
    #allocation5 [shape = 's32[1]{0}', space=sflag, size = 0x4, scoped, tag = 'scoped memory for _linear_subspace_fused.1']
    #allocation6 [shape = 'u8[4096]{0}', space=vmem, size = 0x1000, scoped, tag = 'output window, operand 0, single buffered']
    %8 = vsyncpa [#allocation4], 0
    %9 = vsyncpa [#allocation5], 0
    // Predicated region
    $region2: #{_linear_subspace_fused.1} parent=1 // pred_check
      _
    $region3: #{_linear_subspace_fused.1} parent=1 // pred_check_branch
      %11 = sbr.rel (0) target = $region5
    $region4: #{_linear_subspace_fused.1} parent=1 // pred_region
      _
    $region5: #{_linear_subspace_fused.1} parent=1 // pred_fallthru
      _
    // Predicated region
    $region6: #{_linear_subspace_fused.1} parent=1 // pred_check
      _
    $region7: #{_linear_subspace_fused.1} parent=1 // pred_check_branch
      %13 = sbr.rel (0) target = $region9
    $region8: #{_linear_subspace_fused.1} parent=1 // pred_region
      _
    $region9: #{_linear_subspace_fused.1} parent=1 // pred_fallthru
      _
    // Predicated region
    $region10: #{_linear_subspace_fused.1} parent=1 // pred_check
      _
    $region11: #{_linear_subspace_fused.1} parent=1 // pred_check_branch
      %15 = sbr.rel (0) target = $region13
    $region12: #{_linear_subspace_fused.1} parent=1 // pred_region
      %s17 = ssub.s32 1664, 1664
      %18 = vsyncadd [#allocation4], %s17
      %s19 = sshll.u32 [#allocation3], 4
      %s20 = int_to_ptr.vmem [resolvable:$true] %s19
      %25 = dma.hbm_to_vmem [thread:$0]  %s2, 1664, %s20, [#allocation4], 128, 128, 8
    $region13: #{_linear_subspace_fused.1} parent=1 // pred_fallthru
      _
    // Predicated region
    $region14: #{_linear_subspace_fused.1} parent=1 // pred_check
      _
    $region15: #{_linear_subspace_fused.1} parent=1 // pred_check_branch
      %27 = sbr.rel (0) target = $region17
    $region16: #{_linear_subspace_fused.1} parent=1 // pred_region
      %28 = dma.done [#allocation4], 1664
    $region17: #{_linear_subspace_fused.1} parent=1 // pred_fallthru
      _
    %v29 = vld [vmem:[%s0] sm:$0xff]
    %v30 = vld [vmem:[%s1] sm:$0xff]
    %32 = vset.pattern.permute.xlu0 0
    %33 = vperm.xlu0 %32, %v30
    %v34 = vpop.permute.xlu0 %33
    %v36 = vmul.f32 %v34, %v29
    %vm37 = vcmask 261120
    %38 = vst.msk [vmem:[#allocation2] sm:$0xff] %vm37, %v36
    %39 = vset.pattern.permute.xlu0 1
    %40 = vperm.xlu0 %39, %v30
    %v41 = vpop.permute.xlu0 %40
    %v43 = vmul.f32 %v41, %v29
    %45 = vrot.lane.b32.xlu0 %v43, 32
    %v46 = vpop.permute.xlu0 %45
    %vm48 = vcmask 523520
    %49 = vst.msk [vmem:[#allocation2] sm:$0xff] %vm48, %v46
    %50 = vset.pattern.permute.xlu0 2
    %51 = vperm.xlu0 %50, %v30
    %v52 = vpop.permute.xlu0 %51
    %v54 = vmul.f32 %v52, %v29
    %56 = vrot.lane.b32.xlu0 %v54, 64
    %v57 = vpop.permute.xlu0 %56
    %vm59 = vcmask 785920
    %60 = vst.msk [vmem:[#allocation2] sm:$0xff] %vm59, %v57
    %61 = vrot.lane.b32.xlu0 %v30, 96
    %v62 = vpop.permute.xlu0 %61
    %vm64 = vcmask 810752
    %65 = vst.msk [vmem:[#allocation2] sm:$0xff] %vm64, %v62
    %v66 = vld [vmem:[#allocation2] sm:$0xff]
    %v67 = vld [vmem:[#allocation3] sm:$0xff]
    %v68 = vld [vmem:[#allocation3 + $0x8] sm:$0xff]
    %v69 = vld [vmem:[#allocation3 + $0x10] sm:$0xff]
    %v70 = vld [vmem:[#allocation3 + $0x18] sm:$0xff]
    %v71 = vld [vmem:[#allocation3 + $0x20] sm:$0xff]
    %v72 = vld [vmem:[#allocation3 + $0x28] sm:$0xff]
    %v73 = vld [vmem:[#allocation3 + $0x30] sm:$0xff]
    %v74 = vld [vmem:[#allocation3 + $0x38] sm:$0xff]
    %v75 = vld [vmem:[#allocation3 + $0x40] sm:$0xff]
    %v76 = vld [vmem:[#allocation3 + $0x48] sm:$0xff]
    %v77 = vld [vmem:[#allocation3 + $0x50] sm:$0xff]
    %v78 = vld [vmem:[#allocation3 + $0x58] sm:$0xff]
    %v79 = vld [vmem:[#allocation3 + $0x60] sm:$0x7]
    %vm80 = vcmask 809984
    %v82 = vsel %vm80, %v66, 0
    %vm84 = vcmask 1042432
    %v86 = vsel %vm84, %v79, 0
    %88 = vmatprep.subr.mxu0 0.0
    %89 = vmatpush1.msra.mxu0 0.0
    %90 = vmatprep.subr.mxu0 0.0
    %91 = vmatpush1.msra.mxu0 0.0
    %92 = vmatprep.subr.mxu0 0.0
    %93 = vmatpush1.msra.mxu0 0.0
    %94 = vmatprep.subr.mxu0 0.0
    %95 = vmatpush1.msra.mxu0 %v86
    %96 = vmatprep.subr.mxu0 0.0
    %97 = vmatpush1.msra.mxu0 %v78
    %98 = vmatprep.subr.mxu0 0.0
    %99 = vmatpush1.msra.mxu0 %v77
    %100 = vmatprep.subr.mxu0 0.0
    %101 = vmatpush1.msra.mxu0 %v76
    %102 = vmatprep.subr.mxu0 0.0
    %103 = vmatpush1.msra.mxu0 %v75
    %104 = vmatprep.subr.mxu0 0.0
    %105 = vmatpush1.msra.mxu0 %v74
    %106 = vmatprep.subr.mxu0 0.0
    %107 = vmatpush1.msra.mxu0 %v73
    %108 = vmatprep.subr.mxu0 0.0
    %109 = vmatpush1.msra.mxu0 %v72
    %110 = vmatprep.subr.mxu0 0.0
    %111 = vmatpush1.msra.mxu0 %v71
    %112 = vmatprep.subr.mxu0 0.0
    %113 = vmatpush1.msra.mxu0 %v70
    %114 = vmatprep.subr.mxu0 0.0
    %115 = vmatpush1.msra.mxu0 %v69
    %116 = vmatprep.subr.mxu0 0.0
    %117 = vmatpush1.msra.mxu0 %v68
    %118 = vmatprep.subr.mxu0 0.0
    %119 = vmatpush1.msra.mxu0 %v67
    %120 = vmatprep.subr.mxu0 0.0
    %121 = vmatpush2.msra.mxu0 0.0
    %122 = vmatprep.subr.mxu0 0.0
    %123 = vmatpush2.msra.mxu0 0.0
    %124 = vmatprep.subr.mxu0 0.0
    %125 = vmatpush2.msra.mxu0 0.0
    %126 = vmatprep.subr.mxu0 0.0
    %127 = vmatpush2.msra.mxu0 0.0
    %128 = vmatprep.subr.mxu0 0.0
    %129 = vmatpush2.msra.mxu0 0.0
    %130 = vmatprep.subr.mxu0 0.0
    %131 = vmatpush2.msra.mxu0 0.0
    %132 = vmatprep.subr.mxu0 0.0
    %133 = vmatpush2.msra.mxu0 0.0
    %134 = vmatprep.subr.mxu0 0.0
    %135 = vmatpush2.msra.mxu0 0.0
    %136 = vmatprep.subr.mxu0 0.0
    %137 = vmatpush2.msra.mxu0 0.0
    %138 = vmatprep.subr.mxu0 0.0
    %139 = vmatpush2.msra.mxu0 0.0
    %140 = vmatprep.subr.mxu0 0.0
    %141 = vmatpush2.msra.mxu0 0.0
    %142 = vmatprep.subr.mxu0 0.0
    %143 = vmatpush2.msra.mxu0 0.0
    %144 = vmatprep.subr.mxu0 0.0
    %145 = vmatpush2.msra.mxu0 0.0
    %146 = vmatprep.subr.mxu0 0.0
    %147 = vmatpush2.msra.mxu0 0.0
    %148 = vmatprep.subr.mxu0 0.0
    %149 = vmatpush2.msra.mxu0 0.0
    %150 = vmatprep.subr.mxu0 0.0
    %151 = vmatpush2.msra.mxu0 0.0
    %152 = vmatprep.mubr.f32.mxu0 0.0
    %153 = vmatmul.mubr.f32.gmra.mxu0 %v82
    %v154 = vpop.f32.mrf.mxu0
    %v155 = vadd.f32 0.0, %v154
    %v156 = vpop.f32.mrf.mxu0
    %157 = vdwg.mxu0
    %158 = vst [vmem:[#allocation6] sm:$0xff] %v155
    // Predicated region
    $region18: #{_linear_subspace_fused.1} parent=1 // pred_check
      _
    $region19: #{_linear_subspace_fused.1} parent=1 // pred_check_branch
      %160 = sbr.rel (0) target = $region21
    $region20: #{_linear_subspace_fused.1} parent=1 // pred_region
      %s162 = ssub.s32 128, 128
      %163 = vsyncadd [#allocation5], %s162
      %s165 = sshll.u32 [#allocation6], 4
      %s166 = int_to_ptr.vmem [resolvable:$true] %s165
      %168 = dma.vmem_to_hbm [thread:$0]  %s166, 128, %s3, [#allocation5]
    $region21: #{_linear_subspace_fused.1} parent=1 // pred_fallthru
      _
    // Predicated region
    $region22: #{_linear_subspace_fused.1} parent=1 // pred_check
      _
    $region23: #{_linear_subspace_fused.1} parent=1 // pred_check_branch
      %170 = sbr.rel (0) target = $region25
    $region24: #{_linear_subspace_fused.1} parent=1 // pred_region
      %171 = dma.done [#allocation5], 128
    $region25: #{_linear_subspace_fused.1} parent=1 // pred_fallthru
      _
    %172 = vsyncpa [#allocation4], 1
    %173 = vsyncpa [#allocation5], 1

</llo_original>
